<compile_context>
chip_gen: v5e
topology: v5e:2x2
jax: 0.10.0
libtpu: 0.0.40
codegen_flags: <defaults>
</compile_context>

<pallas_src>
import jax
import jax.numpy as jnp
from jax import lax
from jax.experimental import pallas as pl
from jax.experimental.pallas import tpu as pltpu


def _make_grad_kernel(w, k, r, bh):
    """Build the stencil kernel for one (bh, k*w) packed block.

    Packed layout: sublane s = (image-in-block)*r + rr, lane c = mm*w + j maps
    to original pixel (row = k*rr + mm, col = j) of that image.  k*w is chosen
    to be a multiple of 128 whenever possible (lane-dense).
    """
    L = k * w

    def kernel(x_ref, b_ref, o_ref):
        x = x_ref[...]                                        # (bh, L) f32

        # Skinny masks: (1, L) / (bh, 1) iota+compare only (negligible VPU
        # work), broadcast lazily inside the selects.
        col = lax.broadcasted_iota(jnp.int32, (1, L), 1)
        j = col % w                                           # original column
        first_col = j == 0
        last_col = j == w - 1
        row = lax.broadcasted_iota(jnp.int32, (bh, 1), 0)
        rr = row % r                                          # packed row within image
        img_top = rr == 0
        img_bot = rr == r - 1

        # ---- horizontal replicate-padded 3-tap sum (lane rolls on the XLU) ----
        left = jnp.where(first_col, x, pltpu.roll(x, 1, axis=1))       # x[i, j-1]
        right = jnp.where(last_col, x, pltpu.roll(x, L - 1, axis=1))   # x[i, j+1]
        r3 = left + x + right

        # ---- vertical 3-tap sum of r3 (completes the 3x3 box, replicate rows) ----
        if k == 1:
            # rows map 1:1 to sublanes
            up = jnp.where(img_top, r3, pltpu.roll(r3, 1, axis=0))
            down = jnp.where(img_bot, r3, pltpu.roll(r3, bh - 1, axis=0))
        else:
            lane_lo = col < w                  # rows sitting in the first lane slot
            lane_hi = col >= (k - 1) * w       # rows sitting in the last lane slot
            rW = pltpu.roll(r3, w, axis=1)          # previous row, same packed row
            rW2 = pltpu.roll(r3, L - w, axis=1)     # next row, same packed row
            if r == 1:
                # whole image lives in one packed row
                up = jnp.where(lane_lo, r3, rW)
                down = jnp.where(lane_hi, r3, rW2)
            else:
                up = jnp.where(
                    lane_lo,
                    jnp.where(img_top, r3, pltpu.roll(rW, 1, axis=0)),
                    rW)
                down = jnp.where(
                    lane_hi,
                    jnp.where(img_bot, r3, pltpu.roll(rW2, bh - 1, axis=0)),
                    rW2)
        s9 = up + r3 + down                                   # full 3x3 box sum

        # taps: 1/8 on the 8 neighbours, -1 on the centre, plus the conv bias:
        #   out = (s9 - x)/8 - x + b  ==  0.125*s9 - 1.125*x + b
        o_ref[...] = s9 * 0.125 - x * 1.125 + b_ref[0]

    return kernel


def _pick_row_pack(h, w):
    """Smallest k with h % k == 0 and (k*w) % 128 == 0 (lane-dense packing)."""
    if w % 128 == 0:
        return 1
    for k in range(1, min(h, 128) + 1):
        if h % k == 0 and (k * w) % 128 == 0:
            return k
    return 1  # TODO(synk): odd W -> lane-underfilled fallback layout


def _pick_images_per_block(n, r, img_bytes, target_bytes):
    """Images per grid step: sublane-aligned (8,128) blocks, >= 2 grid steps."""
    cap = max(1, n // 2)            # keep >= 2 grid steps when n >= 2 (v7x: 2 TCs)
    best = 0
    for tn in range(1, cap + 1):
        if tn * img_bytes > target_bytes:
            break
        if (tn * r) % 8 == 0:       # block height must be a multiple of 8 sublanes
            best = tn
    if best == 0:
        best = n                    # whole-array block (tiny problems / odd shapes)
    return best


def _vmem_limit_bytes():
    # 128 MiB physical on v5e/v6e, 64 MiB on v7x; leave headroom for compiler
    # scratch.  Fall back to a v7x-safe 48 MiB if the query is unavailable.
    try:
        phys = pltpu.get_tpu_info().vmem_capacity_bytes
        return int(min(phys - 16 * 1024 * 1024, 100 * 1024 * 1024))
    except Exception:
        return 48 * 1024 * 1024


def grad_forward(x, bias):
    """x: (N, 1, H, W) f32 NCHW.  Returns (N, 1, H, W) f32."""
    n, c, h, w = x.shape
    assert c == 1, "grad module is only runnable with a single channel"

    # Lane-dense packing: fold k image rows into the lane axis (free reshape).
    k = _pick_row_pack(h, w)
    L = k * w
    r = h // k                      # packed rows per image
    g = n * r                       # packed rows total
    img_bytes = h * w * 4

    vmem_limit = _vmem_limit_bytes()
    # Budget model: double-buffered in + out (4x) plus ~8 block-sized live
    # temporaries inside the stencil -> ~16x block size must fit.
    target_block = min(2 << 20, vmem_limit // 16)
    tn = _pick_images_per_block(n, r, img_bytes, target_block)
    bh = tn * r
    block_bytes = bh * L * 4
    assert 16 * block_bytes <= vmem_limit, "image/block too large for whole-image tiling"
    # TODO(synk): for single images larger than the VMEM budget, add a grid
    # axis over H with a +/-1-row halo instead of whole-image blocks.

    x2 = x.reshape(g, L)            # metadata-only reshape (row-major contiguous)

    cost = pl.CostEstimate(
        flops=14 * n * h * w,                     # shift-and-add stencil (VPU)
        transcendentals=0,
        bytes_accessed=2 * n * h * w * 4 + 4,     # read x + write out (+ bias)
    )

    out = pl.pallas_call(
        _make_grad_kernel(w, k, r, bh),
        out_shape=jax.ShapeDtypeStruct((g, L), jnp.float32),
        grid=(pl.cdiv(n, tn),),
        in_specs=[
            pl.BlockSpec((bh, L), lambda i: (i, 0)),            # tn images/step
            pl.BlockSpec(memory_space=pltpu.MemorySpace.SMEM),  # bias scalar
        ],
        out_specs=pl.BlockSpec((bh, L), lambda i: (i, 0)),
        compiler_params=pltpu.CompilerParams(
            dimension_semantics=("parallel",),
            vmem_limit_bytes=vmem_limit,
        ),
        cost_estimate=cost,
    )(x2, bias)

    return out.reshape(n, 1, h, w)


if __name__ == "__main__":
    key = jax.random.PRNGKey(0)
    k_x, k_b = jax.random.split(key)

    # Small shapes consistent with the module's forward: N=2, C=1, H=W=16.
    N, C, H, W = 2, 1, 16, 16
    x = jax.random.normal(k_x, (N, C, H, W), dtype=jnp.float32)

    # Conv2d bias (out_channels=1), PyTorch-style deterministic init in-script.
    fan_in = C * 3 * 3
    bound = 1.0 / (fan_in ** 0.5)
    bias = jax.random.uniform(k_b, (1,), jnp.float32, -bound, bound)

    y = grad_forward(x, bias)
    jax.block_until_ready(y)

    # Plain-JAX reference of the same conv (fixed taps, replicate pad, bias).
    weight = jnp.array(
        [[1 / 8, 1 / 8, 1 / 8],
         [1 / 8, -1.0, 1 / 8],
         [1 / 8, 1 / 8, 1 / 8]],
        dtype=jnp.float32,
    )
    xpad = jnp.pad(x.reshape(N, H, W), ((0, 0), (1, 1), (1, 1)), mode="edge")
    ref = sum(
        weight[di, dj] * xpad[:, di:di + H, dj:dj + W]
        for di in range(3) for dj in range(3)
    ) + bias[0]
    ref = ref.reshape(N, 1, H, W)
    assert jnp.allclose(y, ref, atol=1e-5, rtol=1e-5), float(jnp.max(jnp.abs(y - ref)))

    print("KERNEL_OK")
</pallas_src>

<mosaic_0001>
module attributes {stable_mosaic.version = 11 : i64} {
  func.func @kernel(%arg0: i32, %arg1: memref<4x128xf32, #tpu.memory_space<vmem>>, %arg2: memref<1xf32, #tpu.memory_space<smem>>, %arg3: memref<4x128xf32, #tpu.memory_space<vmem>>) attributes {dimension_semantics = [#tpu.dimension_semantics<parallel>], iteration_bounds = array<i64: 1>, scalar_prefetch = 0 : i64, scratch_operands = 0 : i64, tpu.core_type = #tpu.core_type<tc>, window_params = [{transform_indices = @transform_0, window_bounds = array<i64: 4, 128>}, {transform_indices = @transform_1, window_bounds = array<i64: 1>}, {transform_indices = @transform_2, window_bounds = array<i64: 4, 128>}]} {
    %c0 = arith.constant 0 : index
    %c0_0 = arith.constant 0 : index
    %0 = vector.load %arg1[%c0, %c0_0] : memref<4x128xf32, #tpu.memory_space<vmem>>, vector<4x128xf32>
    %1 = tpu.iota {dimensions = array<i32: 1>} : vector<1x128xi32>
    %c16_i32 = arith.constant 16 : i32
    %c0_i32 = arith.constant 0 : i32
    %2 = arith.cmpi eq, %c16_i32, %c0_i32 : i32
    %c1_i32 = arith.constant 1 : i32
    %3 = arith.select %2, %c1_i32, %c16_i32 : i32
    %4 = vector.broadcast %3 : i32 to vector<1x128xi32>
    %5 = arith.remsi %1, %4 : vector<1x128xi32>
    %c0_i32_1 = arith.constant 0 : i32
    %6 = vector.broadcast %c0_i32_1 : i32 to vector<1x128xi32>
    %7 = arith.cmpi ne, %5, %6 : vector<1x128xi32>
    %c0_i32_2 = arith.constant 0 : i32
    %8 = vector.broadcast %c0_i32_2 : i32 to vector<1x128xi32>
    %9 = arith.cmpi slt, %5, %8 : vector<1x128xi32>
    %c0_i32_3 = arith.constant 0 : i32
    %10 = arith.cmpi slt, %3, %c0_i32_3 : i32
    %11 = vector.broadcast %10 : i1 to vector<1x128xi1>
    %12 = vector.broadcast %11 : vector<1x128xi1> to vector<1x128xi1>
    %13 = arith.xori %9, %12 : vector<1x128xi1>
    %14 = arith.andi %13, %7 : vector<1x128xi1>
    %15 = vector.broadcast %3 : i32 to vector<1x128xi32>
    %16 = arith.addi %5, %15 : vector<1x128xi32>
    %17 = arith.select %14, %16, %5 : vector<1x128xi1>, vector<1x128xi32>
    %c0_i32_4 = arith.constant 0 : i32
    %18 = vector.broadcast %c0_i32_4 : i32 to vector<1x128xi32>
    %19 = arith.cmpi eq, %17, %18 : vector<1x128xi32>
    %c15_i32 = arith.constant 15 : i32
    %20 = vector.broadcast %c15_i32 : i32 to vector<1x128xi32>
    %21 = arith.cmpi eq, %17, %20 : vector<1x128xi32>
    %22 = tpu.iota {dimensions = array<i32: 0>} : vector<4x1xi32>
    %c2_i32 = arith.constant 2 : i32
    %c0_i32_5 = arith.constant 0 : i32
    %23 = arith.cmpi eq, %c2_i32, %c0_i32_5 : i32
    %c1_i32_6 = arith.constant 1 : i32
    %24 = arith.select %23, %c1_i32_6, %c2_i32 : i32
    %25 = vector.broadcast %24 : i32 to vector<4x1xi32>
    %26 = arith.remsi %22, %25 : vector<4x1xi32>
    %c0_i32_7 = arith.constant 0 : i32
    %27 = vector.broadcast %c0_i32_7 : i32 to vector<4x1xi32>
    %28 = arith.cmpi ne, %26, %27 : vector<4x1xi32>
    %c0_i32_8 = arith.constant 0 : i32
    %29 = vector.broadcast %c0_i32_8 : i32 to vector<4x1xi32>
    %30 = arith.cmpi slt, %26, %29 : vector<4x1xi32>
    %c0_i32_9 = arith.constant 0 : i32
    %31 = arith.cmpi slt, %24, %c0_i32_9 : i32
    %32 = vector.broadcast %31 : i1 to vector<4x1xi1>
    %33 = vector.broadcast %32 : vector<4x1xi1> to vector<4x1xi1>
    %34 = arith.xori %30, %33 : vector<4x1xi1>
    %35 = arith.andi %34, %28 : vector<4x1xi1>
    %36 = vector.broadcast %24 : i32 to vector<4x1xi32>
    %37 = arith.addi %26, %36 : vector<4x1xi32>
    %38 = arith.select %35, %37, %26 : vector<4x1xi1>, vector<4x1xi32>
    %c0_i32_10 = arith.constant 0 : i32
    %39 = vector.broadcast %c0_i32_10 : i32 to vector<4x1xi32>
    %40 = arith.cmpi eq, %38, %39 : vector<4x1xi32>
    %c1_i32_11 = arith.constant 1 : i32
    %41 = vector.broadcast %c1_i32_11 : i32 to vector<4x1xi32>
    %42 = arith.cmpi eq, %38, %41 : vector<4x1xi32>
    %c1_i32_12 = arith.constant 1 : i32
    %43 = tpu.dynamic_rotate %0 by %c1_i32_12 dim 1 : vector<4x128xf32>, i32 -> vector<4x128xf32>
    %44 = vector.shape_cast %19 : vector<1x128xi1> to vector<1x128xi1>
    %45 = vector.broadcast %44 : vector<1x128xi1> to vector<4x128xi1>
    %46 = arith.select %45, %0, %43 : vector<4x128xi1>, vector<4x128xf32>
    %c127_i32 = arith.constant 127 : i32
    %47 = tpu.dynamic_rotate %0 by %c127_i32 dim 1 : vector<4x128xf32>, i32 -> vector<4x128xf32>
    %48 = vector.shape_cast %21 : vector<1x128xi1> to vector<1x128xi1>
    %49 = vector.broadcast %48 : vector<1x128xi1> to vector<4x128xi1>
    %50 = arith.select %49, %0, %47 : vector<4x128xi1>, vector<4x128xf32>
    %51 = arith.addf %46, %0 : vector<4x128xf32>
    %52 = arith.addf %51, %50 : vector<4x128xf32>
    %c16_i32_13 = arith.constant 16 : i32
    %53 = vector.broadcast %c16_i32_13 : i32 to vector<1x128xi32>
    %54 = arith.cmpi slt, %1, %53 : vector<1x128xi32>
    %c112_i32 = arith.constant 112 : i32
    %55 = vector.broadcast %c112_i32 : i32 to vector<1x128xi32>
    %56 = arith.cmpi sge, %1, %55 : vector<1x128xi32>
    %c16_i32_14 = arith.constant 16 : i32
    %57 = tpu.dynamic_rotate %52 by %c16_i32_14 dim 1 : vector<4x128xf32>, i32 -> vector<4x128xf32>
    %c112_i32_15 = arith.constant 112 : i32
    %58 = tpu.dynamic_rotate %52 by %c112_i32_15 dim 1 : vector<4x128xf32>, i32 -> vector<4x128xf32>
    %c1_i32_16 = arith.constant 1 : i32
    %59 = tpu.dynamic_rotate %57 by %c1_i32_16 dim 0 : vector<4x128xf32>, i32 -> vector<4x128xf32>
    %60 = vector.shape_cast %40 : vector<4x1xi1> to vector<4x1xi1>
    %61 = vector.broadcast %60 : vector<4x1xi1> to vector<4x128xi1>
    %62 = arith.select %61, %52, %59 : vector<4x128xi1>, vector<4x128xf32>
    %63 = vector.shape_cast %54 : vector<1x128xi1> to vector<1x128xi1>
    %64 = vector.broadcast %63 : vector<1x128xi1> to vector<4x128xi1>
    %65 = arith.select %64, %62, %57 : vector<4x128xi1>, vector<4x128xf32>
    %c3_i32 = arith.constant 3 : i32
    %66 = tpu.dynamic_rotate %58 by %c3_i32 dim 0 : vector<4x128xf32>, i32 -> vector<4x128xf32>
    %67 = vector.shape_cast %42 : vector<4x1xi1> to vector<4x1xi1>
    %68 = vector.broadcast %67 : vector<4x1xi1> to vector<4x128xi1>
    %69 = arith.select %68, %52, %66 : vector<4x128xi1>, vector<4x128xf32>
    %70 = vector.shape_cast %56 : vector<1x128xi1> to vector<1x128xi1>
    %71 = vector.broadcast %70 : vector<1x128xi1> to vector<4x128xi1>
    %72 = arith.select %71, %69, %58 : vector<4x128xi1>, vector<4x128xf32>
    %73 = arith.addf %65, %52 : vector<4x128xf32>
    %74 = arith.addf %73, %72 : vector<4x128xf32>
    %cst = arith.constant 1.250000e-01 : f32
    %75 = vector.broadcast %cst : f32 to vector<4x128xf32>
    %76 = arith.mulf %74, %75 : vector<4x128xf32>
    %cst_17 = arith.constant 1.125000e+00 : f32
    %77 = vector.broadcast %cst_17 : f32 to vector<4x128xf32>
    %78 = arith.mulf %0, %77 : vector<4x128xf32>
    %79 = arith.subf %76, %78 : vector<4x128xf32>
    %c0_18 = arith.constant 0 : index
    %80 = memref.load %arg2[%c0_18] : memref<1xf32, #tpu.memory_space<smem>>
    %81 = vector.broadcast %80 : f32 to vector<4x128xf32>
    %82 = arith.addf %79, %81 : vector<4x128xf32>
    %c0_19 = arith.constant 0 : index
    %c0_20 = arith.constant 0 : index
    %83 = vector.load %arg3[%c0_19, %c0_20] : memref<4x128xf32, #tpu.memory_space<vmem>>, vector<4x128xf32>
    tpu.vector_store %arg3[%c0_19, %c0_20], %82 {strides = array<i32>} : memref<4x128xf32, #tpu.memory_space<vmem>>, vector<4x128xf32>,
    return
  }
  func.func @transform_0(%arg0: i32) -> (i32, i32) {
    %c0_i32 = arith.constant 0 : i32
    %c0_i32_0 = arith.constant 0 : i32
    return %arg0, %c0_i32 : i32, i32
  }
  func.func @transform_1(%arg0: i32) -> i32 {
    %c0_i32 = arith.constant 0 : i32
    %c0_i32_0 = arith.constant 0 : i32
    return %c0_i32 : i32
  }
  func.func @transform_2(%arg0: i32) -> (i32, i32) {
    %c0_i32 = arith.constant 0 : i32
    %c0_i32_0 = arith.constant 0 : i32
    return %arg0, %c0_i32 : i32, i32
  }
}

</mosaic_0001>

<llo_original>
// kernel: tpu_custom_call.1
$region0: #{tpu_custom_call.1}
  #allocation0 [shape = 'u32[]', space=smem, size = 0x4, offset = 0x4, fixed_abs, tag = 'smem constant byte address 0x4 - core index']
  #allocation1 [shape = 'u32[72,128]{1,0:T(1,128)}', space=vmem, size = 0x9000, scoped, tag = 'internal scratch']
  #allocation2 [shape = 'f32[1]{0:T(128)S(6)}', space=smem, size = 0x200, scoped, tag = 'scoped memory for tpu_custom_call.1']
  %s0 = inlined_call_operand.hbm [shape: f32[4,128], index: 0, kind: input, shape index: {}]
  %s1 = inlined_call_operand.<no memory space> [shape: f32[1], index: 1, kind: input, shape index: {}]
  %s2 = inlined_call_operand.hbm [shape: f32[4,128], index: 2, kind: output, shape index: {}]
  %s3 = sld [smem:[#allocation0]]
  $region22: #{tpu_custom_call.1} parent=0
    _
  %s5 = ssub.s32 1, %s3
  %s6 = scalar_select 0, %s5, %s3
  %7 = sst [smem:[#allocation2]] %s1
  $region1: #{tpu_custom_call.1} parent=0
    #allocation3 [shape = 'u8[2048]{0}', space=vmem, size = 0x800, scoped, tag = 'input window, operand 0, single buffered']
    #allocation4 [shape = 's32[1]{0}', space=sflag, size = 0x4, scoped, tag = 'scoped memory for tpu_custom_call.1']
    #allocation5 [shape = 's32[1]{0}', space=sflag, size = 0x4, scoped, tag = 'scoped memory for tpu_custom_call.1']
    #allocation6 [shape = 'u8[2048]{0}', space=vmem, size = 0x800, scoped, tag = 'output window, operand 0, single buffered']
    %8 = vsyncpa [#allocation4], 0
    %9 = vsyncpa [#allocation5], 0
    // Predicated region
    $region2: #{tpu_custom_call.1} parent=1 // pred_check
      _
    $region3: #{tpu_custom_call.1} parent=1 // pred_check_branch
      %11 = sbr.rel (0) target = $region5
    $region4: #{tpu_custom_call.1} parent=1 // pred_region
      %13 = vsyncadd [#allocation4], 0
      %s15 = sshll.u32 %s0, 4
      %s16 = int_to_ptr.hbm [resolvable:$true] %s15
      %s17 = sshll.u32 [#allocation3], 4
      %s18 = int_to_ptr.vmem [resolvable:$true] %s17
      %20 = dma.hbm_to_vmem [thread:$0]  %s16, 64, %s18, [#allocation4]
    $region5: #{tpu_custom_call.1} parent=1 // pred_fallthru
      _
    // Predicated region
    $region6: #{tpu_custom_call.1} parent=1 // pred_check
      _
    $region7: #{tpu_custom_call.1} parent=1 // pred_check_branch
      %22 = sbr.rel (0) target = $region9
    $region8: #{tpu_custom_call.1} parent=1 // pred_region
      _
    $region9: #{tpu_custom_call.1} parent=1 // pred_fallthru
      _
    // Predicated region
    $region10: #{tpu_custom_call.1} parent=1 // pred_check
      _
    $region11: #{tpu_custom_call.1} parent=1 // pred_check_branch
      %24 = sbr.rel (0) target = $region13
    $region12: #{tpu_custom_call.1} parent=1 // pred_region
      %26 = dma.done [#allocation4], 64
    $region13: #{tpu_custom_call.1} parent=1 // pred_fallthru
      _
    %v27 = vld [vmem:[#allocation3] sm:$0xf]
    %v28 = vlaneseq
    %v29 = vand.u32 %v28, 127
    %vm30 = vcmp.lt.s32.totalorder %v29, 0
    %v31 = vsub.s32 0, %v29
    %v32 = vsel %vm30, %v31, %v29
    %v33 = vshrl.u32 %v32, 4
    %v34 = vand.u32 %v32, 15
    %v35 = vsub.s32 0, %v34
    %v36 = vsel %vm30, %v35, %v34
    %vm37 = vcmp.ne.s32.totalorder %v36, 0
    %vm38 = vcmp.lt.s32.totalorder %v36, 0
    %vm39 = vmand %vm38, %vm37
    %v40 = vadd.s32 %v36, 16
    %v41 = vsel %vm39, %v40, %v36
    %vm42 = vcmp.eq.s32.totalorder %v41, 0
    %vm43 = vcmp.eq.s32.totalorder %v41, 15
    %v44 = vlaneseq
    %v45 = vshrl.u32 %v44, 7
    %vm46 = vcmp.lt.s32.totalorder %v45, 0
    %v47 = vsub.s32 0, %v45
    %v48 = vsel %vm46, %v47, %v45
    %v49 = vshrl.u32 %v48, 1
    %v50 = vand.u32 %v48, 1
    %v51 = vsub.s32 0, %v50
    %v52 = vsel %vm46, %v51, %v50
    %vm53 = vcmp.ne.s32.totalorder %v52, 0
    %vm54 = vcmp.lt.s32.totalorder %v52, 0
    %vm55 = vmand %vm54, %vm53
    %v56 = vadd.s32 %v52, 2
    %v57 = vsel %vm55, %v56, %v52
    %vm58 = vcmp.eq.s32.totalorder %v57, 0
    %vm59 = vcmp.eq.s32.totalorder %v57, 1
    %60 = vrot.lane.b32.xlu0 %v27, 1
    %v61 = vpop.permute.xlu0 %60
    %v62 = vsel %vm42, 1, 0
    %vm63 = vcmp.eq.s32.totalorder %v62, 1
    %v64 = vsel %vm63, %v27, %v61
    %65 = vrot.lane.b32.xlu0 %v27, 127
    %v66 = vpop.permute.xlu0 %65
    %v67 = vsel %vm43, 1, 0
    %vm68 = vcmp.eq.s32.totalorder %v67, 1
    %v69 = vsel %vm68, %v27, %v66
    %v70 = vadd.f32 %v64, %v27
    %v71 = vadd.f32 %v70, %v69
    %vm72 = vcmp.lt.s32.totalorder %v29, 16
    %vm73 = vcmp.ge.s32.totalorder %v29, 112
    %74 = vrot.lane.b32.xlu0 %v71, 16
    %v75 = vpop.permute.xlu0 %74
    %76 = vrot.lane.b32.xlu0 %v71, 112
    %v77 = vpop.permute.xlu0 %76
    %vm78 = vcmask 1047556
    %v79 = vrot.slane %v75, 4
    %v80 = vsel %vm78, %v79, %v75
    %v81 = vrot.slane %v80, 4
    %v82 = vsel %vm78, %v81, %v75
    %v83 = vsel %vm58, 1, 0
    %vm84 = vcmp.eq.s32.totalorder %v83, 1
    %v86 = vrot.slane %v82, 3
    %v88 = vsel %vm84, %v71, %v86
    %v89 = vsel %vm72, 1, 0
    %vm90 = vcmp.eq.s32.totalorder %v89, 1
    %v91 = vsel %vm90, %v88, %v75
    %v92 = vrot.slane %v77, 4
    %v93 = vsel %vm78, %v92, %v77
    %v94 = vrot.slane %v93, 4
    %v95 = vsel %vm78, %v94, %v77
    %v96 = vsel %vm59, 1, 0
    %vm97 = vcmp.eq.s32.totalorder %v96, 1
    %v99 = vrot.slane %v95, 1
    %v101 = vsel %vm97, %v71, %v99
    %v102 = vsel %vm73, 1, 0
    %vm103 = vcmp.eq.s32.totalorder %v102, 1
    %v104 = vsel %vm103, %v101, %v77
    %v105 = vadd.f32 %v91, %v71
    %v106 = vadd.f32 %v105, %v104
    %v107 = vmul.f32 %v106, 0.125
    %v108 = vmul.f32 %v27, 1.125
    %v109 = vsub.f32 %v107, %v108
    %s110 = sld [smem:[#allocation2]]
    %v111 = vstv %s110
    %v112 = vadd.f32 %v109, %v111
    %113 = vst [vmem:[#allocation6] sm:$0xf] %v112
    // Predicated region
    $region14: #{tpu_custom_call.1} parent=1 // pred_check
      _
    $region15: #{tpu_custom_call.1} parent=1 // pred_check_branch
      %115 = sbr.rel (0) target = $region17
    $region16: #{tpu_custom_call.1} parent=1 // pred_region
      %117 = vsyncadd [#allocation5], 0
      %s119 = sshll.u32 [#allocation6], 4
      %s120 = int_to_ptr.vmem [resolvable:$true] %s119
      %s121 = sshll.u32 %s2, 4
      %s122 = int_to_ptr.hbm [resolvable:$true] %s121
      %124 = dma.vmem_to_hbm [thread:$0]  %s120, 64, %s122, [#allocation5]
    $region17: #{tpu_custom_call.1} parent=1 // pred_fallthru
      _
    // Predicated region
    $region18: #{tpu_custom_call.1} parent=1 // pred_check
      _
    $region19: #{tpu_custom_call.1} parent=1 // pred_check_branch
      %126 = sbr.rel (0) target = $region21
    $region20: #{tpu_custom_call.1} parent=1 // pred_region
      %128 = dma.done [#allocation5], 64
    $region21: #{tpu_custom_call.1} parent=1 // pred_fallthru
      _
    %129 = vsyncpa [#allocation4], 1
    %130 = vsyncpa [#allocation5], 1

</llo_original>
